<compile_context>
chip_gen: v5e
topology: v5e:2x2
jax: 0.10.0
libtpu: 0.0.40
codegen_flags: <defaults>
</compile_context>

<pallas_src>
import jax
import jax.numpy as jnp
from jax.experimental import pallas as pl
from jax.experimental.pallas import tpu as pltpu


_LANE = 128                  # vreg lane width
_SUBLANE = 8                 # vreg sublane count
_DEFAULT_TILE_ROWS = 1024    # 1024 rows x 128 lanes = 128Ki pixels per grid step


def _round_up(x: int, m: int) -> int:
    return (x + m - 1) // m * m


def _cdiv(a: int, b: int) -> int:
    return -(-a // b)


def _apply_coeffs_kernel(coeff_ref, x_ref, o_ref):
    # coeff_ref: (1, 12, TR, 128), x_ref / o_ref: (1, 3, TR, 128)
    # Leading-axis integer indexing selects contiguous (TR, 128) channel planes.
    x0 = x_ref[0, 0]
    x1 = x_ref[0, 1]
    x2 = x_ref[0, 2]

    r = x0 * coeff_ref[0, 0] + x1 * coeff_ref[0, 1] + x2 * coeff_ref[0, 2] + coeff_ref[0, 3]
    g = x0 * coeff_ref[0, 4] + x1 * coeff_ref[0, 5] + x2 * coeff_ref[0, 6] + coeff_ref[0, 7]
    b = x0 * coeff_ref[0, 8] + x1 * coeff_ref[0, 9] + x2 * coeff_ref[0, 10] + coeff_ref[0, 11]

    o_ref[0, 0] = r.astype(o_ref.dtype)
    o_ref[0, 1] = g.astype(o_ref.dtype)
    o_ref[0, 2] = b.astype(o_ref.dtype)


def _choose_tile_rows(rows: int, n: int, tile_rows: int) -> int:
    """Pick the per-step row-tile (multiple of 8, or the full row extent)."""
    if rows <= _SUBLANE:
        return rows                       # full-extent single block (always legal)
    # Want enough (batch x row-tile) grid steps that DMA/compute stays pipelined
    # and v7x's two TensorCores both get work on small-batch calls.
    min_total_steps = 8
    steps = _cdiv(rows, tile_rows)
    if n * steps < min_total_steps:
        want_steps = _cdiv(min_total_steps, n)
        tr = _round_up(_cdiv(rows, want_steps), _SUBLANE)
        tr = min(tr, (rows // _SUBLANE) * _SUBLANE)    # keep tr <= rows, 8-aligned
        return max(tr, _SUBLANE)
    if rows <= tile_rows:
        return rows                       # one full-extent block per image
    return tile_rows                      # multiple of 8 by construction


def apply_coeffs(coeff: jax.Array, full_res_input: jax.Array,
                 *, tile_rows: int = _DEFAULT_TILE_ROWS) -> jax.Array:
    """Pallas implementation of ApplyCoeffs.forward.

    coeff:          (N, 12, H, W)
    full_res_input: (N, 3, H, W)
    returns:        (N, 3, H, W)
    """
    n, cc, h, w = coeff.shape
    assert cc == 12, f"coeff must have 12 channels, got {cc}"
    nb, ci, hi, wi = full_res_input.shape
    assert (nb, hi, wi) == (n, h, w) and ci == 3

    tile_rows = max(_SUBLANE, (tile_rows // _SUBLANE) * _SUBLANE)
    out_dtype = jnp.promote_types(coeff.dtype, full_res_input.dtype)

    p = h * w
    rows = _cdiv(p, _LANE)
    p_pad = rows * _LANE

    # Flatten pixels (free reshape).  Only a ragged tail (p % 128 != 0) needs a
    # pad; common resolutions go through with zero wrapper copies.
    # TODO(synk): for ragged pixel counts, handle the <=127-px tail in a tiny
    # epilogue (or manual tail DMA) instead of jnp.pad to keep that path
    # copy-free as well.
    coeff_f = coeff.reshape(n, 12, p)
    x_f = full_res_input.reshape(n, 3, p)
    if p_pad != p:
        coeff_f = jnp.pad(coeff_f, ((0, 0), (0, 0), (0, p_pad - p)))
        x_f = jnp.pad(x_f, ((0, 0), (0, 0), (0, p_pad - p)))
    coeff_f = coeff_f.reshape(n, 12, rows, _LANE)
    x_f = x_f.reshape(n, 3, rows, _LANE)

    tr = _choose_tile_rows(rows, n, tile_rows)
    grid = (n, _cdiv(rows, tr))           # partial edge block is masked by Pallas

    itemsize_c = jnp.dtype(coeff.dtype).itemsize
    itemsize_x = jnp.dtype(full_res_input.dtype).itemsize
    itemsize_o = jnp.dtype(out_dtype).itemsize
    bytes_per_pixel = 12 * itemsize_c + 3 * itemsize_x + 3 * itemsize_o

    # Double-buffered per-step VMEM footprint + headroom; the explicit limit
    # keeps the 1024-row default legal on v5e's 16 MiB scoped default while
    # staying well inside v7x's 64 MiB physical VMEM.
    step_bytes = tr * _LANE * bytes_per_pixel
    vmem_limit = max(32 << 20, int(2 * step_bytes * 1.3) + (1 << 20))

    cost = pl.CostEstimate(
        flops=18 * n * rows * _LANE,           # 9 mul + 9 add per pixel
        transcendentals=0,
        bytes_accessed=n * rows * _LANE * bytes_per_pixel,
    )

    out = pl.pallas_call(
        _apply_coeffs_kernel,
        out_shape=jax.ShapeDtypeStruct((n, 3, rows, _LANE), out_dtype),
        grid_spec=pltpu.PrefetchScalarGridSpec(
            num_scalar_prefetch=0,
            grid=grid,
            in_specs=[
                pl.BlockSpec((1, 12, tr, _LANE), lambda i, j: (i, 0, j, 0)),
                pl.BlockSpec((1, 3, tr, _LANE), lambda i, j: (i, 0, j, 0)),
            ],
            out_specs=pl.BlockSpec((1, 3, tr, _LANE), lambda i, j: (i, 0, j, 0)),
        ),
        compiler_params=pltpu.CompilerParams(
            dimension_semantics=("parallel", "parallel"),
            vmem_limit_bytes=vmem_limit,
        ),
        cost_estimate=cost,
    )(coeff_f, x_f)

    out = out.reshape(n, 3, p_pad)
    if p_pad != p:
        out = out[:, :, :p]
    return out.reshape(n, 3, h, w)


def _reference(coeff, x):
    r = jnp.sum(x * coeff[:, 0:3], axis=1, keepdims=True) + coeff[:, 3:4]
    g = jnp.sum(x * coeff[:, 4:7], axis=1, keepdims=True) + coeff[:, 7:8]
    b = jnp.sum(x * coeff[:, 8:11], axis=1, keepdims=True) + coeff[:, 11:12]
    return jnp.concatenate([r, g, b], axis=1)


if __name__ == "__main__":
    key = jax.random.PRNGKey(0)
    k1, k2, k3, k4, k5, k6 = jax.random.split(key, 6)

    # Test 1: small lane-aligned pixel count (16*16 = 256 -> 2 rows, single block).
    N, H, W = 2, 16, 16
    coeff = jax.random.normal(k1, (N, 12, H, W), dtype=jnp.float32)
    full_res_input = jax.random.normal(k2, (N, 3, H, W), dtype=jnp.float32)
    out = apply_coeffs(coeff, full_res_input)
    jax.block_until_ready(out)
    assert out.shape == (N, 3, H, W)
    assert jnp.allclose(out, _reference(coeff, full_res_input), atol=1e-5, rtol=1e-5), \
        "mismatch vs reference (aligned case)"

    # Test 2: ragged pixel count (10*30 = 300 -> padded to 384) exercises pad path.
    N2, H2, W2 = 1, 10, 30
    coeff2 = jax.random.normal(k3, (N2, 12, H2, W2), dtype=jnp.float32)
    x2 = jax.random.normal(k4, (N2, 3, H2, W2), dtype=jnp.float32)
    out2 = apply_coeffs(coeff2, x2)
    jax.block_until_ready(out2)
    assert jnp.allclose(out2, _reference(coeff2, x2), atol=1e-5, rtol=1e-5), \
        "mismatch vs reference (ragged case)"

    # Test 3: aligned but not tile-aligned (40*32 = 1280 px -> 10 rows, tr=8):
    # exercises the cdiv grid with a masked partial edge block (no wrapper pad).
    N3, H3, W3 = 1, 40, 32
    coeff3 = jax.random.normal(k5, (N3, 12, H3, W3), dtype=jnp.float32)
    x3 = jax.random.normal(k6, (N3, 3, H3, W3), dtype=jnp.float32)
    out3 = apply_coeffs(coeff3, x3)
    jax.block_until_ready(out3)
    assert jnp.allclose(out3, _reference(coeff3, x3), atol=1e-5, rtol=1e-5), \
        "mismatch vs reference (partial edge-block case)"

    print("KERNEL_OK")
</pallas_src>

<mosaic_0001>
module attributes {stable_mosaic.version = 11 : i64} {
  func.func @_apply_coeffs_kernel(%arg0: i32, %arg1: i32, %arg2: memref<1x12x2x128xf32, #tpu.memory_space<vmem>>, %arg3: memref<1x3x2x128xf32, #tpu.memory_space<vmem>>, %arg4: memref<1x3x2x128xf32, #tpu.memory_space<vmem>>) attributes {dimension_semantics = [#tpu.dimension_semantics<parallel>, #tpu.dimension_semantics<parallel>], iteration_bounds = array<i64: 2, 1>, scalar_prefetch = 0 : i64, scratch_operands = 0 : i64, tpu.core_type = #tpu.core_type<tc>, window_params = [{transform_indices = @transform_0, window_bounds = array<i64: 1, 12, 2, 128>}, {transform_indices = @transform_1, window_bounds = array<i64: 1, 3, 2, 128>}, {transform_indices = @transform_2, window_bounds = array<i64: 1, 3, 2, 128>}]} {
    %c0 = arith.constant 0 : index
    %c0_0 = arith.constant 0 : index
    %c0_1 = arith.constant 0 : index
    %c0_2 = arith.constant 0 : index
    %0 = vector.load %arg3[%c0, %c0_0, %c0_1, %c0_2] : memref<1x3x2x128xf32, #tpu.memory_space<vmem>>, vector<1x1x2x128xf32>
    %1 = vector.shape_cast %0 : vector<1x1x2x128xf32> to vector<2x128xf32>
    %c0_3 = arith.constant 0 : index
    %c1 = arith.constant 1 : index
    %c0_4 = arith.constant 0 : index
    %c0_5 = arith.constant 0 : index
    %2 = vector.load %arg3[%c0_3, %c1, %c0_4, %c0_5] : memref<1x3x2x128xf32, #tpu.memory_space<vmem>>, vector<1x1x2x128xf32>
    %3 = vector.shape_cast %2 : vector<1x1x2x128xf32> to vector<2x128xf32>
    %c0_6 = arith.constant 0 : index
    %c2 = arith.constant 2 : index
    %c0_7 = arith.constant 0 : index
    %c0_8 = arith.constant 0 : index
    %4 = vector.load %arg3[%c0_6, %c2, %c0_7, %c0_8] : memref<1x3x2x128xf32, #tpu.memory_space<vmem>>, vector<1x1x2x128xf32>
    %5 = vector.shape_cast %4 : vector<1x1x2x128xf32> to vector<2x128xf32>
    %c0_9 = arith.constant 0 : index
    %c0_10 = arith.constant 0 : index
    %c0_11 = arith.constant 0 : index
    %c0_12 = arith.constant 0 : index
    %6 = vector.load %arg2[%c0_9, %c0_10, %c0_11, %c0_12] : memref<1x12x2x128xf32, #tpu.memory_space<vmem>>, vector<1x1x2x128xf32>
    %7 = vector.shape_cast %6 : vector<1x1x2x128xf32> to vector<2x128xf32>
    %8 = arith.mulf %1, %7 : vector<2x128xf32>
    %c0_13 = arith.constant 0 : index
    %c1_14 = arith.constant 1 : index
    %c0_15 = arith.constant 0 : index
    %c0_16 = arith.constant 0 : index
    %9 = vector.load %arg2[%c0_13, %c1_14, %c0_15, %c0_16] : memref<1x12x2x128xf32, #tpu.memory_space<vmem>>, vector<1x1x2x128xf32>
    %10 = vector.shape_cast %9 : vector<1x1x2x128xf32> to vector<2x128xf32>
    %11 = arith.mulf %3, %10 : vector<2x128xf32>
    %12 = arith.addf %8, %11 : vector<2x128xf32>
    %c0_17 = arith.constant 0 : index
    %c2_18 = arith.constant 2 : index
    %c0_19 = arith.constant 0 : index
    %c0_20 = arith.constant 0 : index
    %13 = vector.load %arg2[%c0_17, %c2_18, %c0_19, %c0_20] : memref<1x12x2x128xf32, #tpu.memory_space<vmem>>, vector<1x1x2x128xf32>
    %14 = vector.shape_cast %13 : vector<1x1x2x128xf32> to vector<2x128xf32>
    %15 = arith.mulf %5, %14 : vector<2x128xf32>
    %16 = arith.addf %12, %15 : vector<2x128xf32>
    %c0_21 = arith.constant 0 : index
    %c3 = arith.constant 3 : index
    %c0_22 = arith.constant 0 : index
    %c0_23 = arith.constant 0 : index
    %17 = vector.load %arg2[%c0_21, %c3, %c0_22, %c0_23] : memref<1x12x2x128xf32, #tpu.memory_space<vmem>>, vector<1x1x2x128xf32>
    %18 = vector.shape_cast %17 : vector<1x1x2x128xf32> to vector<2x128xf32>
    %19 = arith.addf %16, %18 : vector<2x128xf32>
    %c0_24 = arith.constant 0 : index
    %c4 = arith.constant 4 : index
    %c0_25 = arith.constant 0 : index
    %c0_26 = arith.constant 0 : index
    %20 = vector.load %arg2[%c0_24, %c4, %c0_25, %c0_26] : memref<1x12x2x128xf32, #tpu.memory_space<vmem>>, vector<1x1x2x128xf32>
    %21 = vector.shape_cast %20 : vector<1x1x2x128xf32> to vector<2x128xf32>
    %22 = arith.mulf %1, %21 : vector<2x128xf32>
    %c0_27 = arith.constant 0 : index
    %c5 = arith.constant 5 : index
    %c0_28 = arith.constant 0 : index
    %c0_29 = arith.constant 0 : index
    %23 = vector.load %arg2[%c0_27, %c5, %c0_28, %c0_29] : memref<1x12x2x128xf32, #tpu.memory_space<vmem>>, vector<1x1x2x128xf32>
    %24 = vector.shape_cast %23 : vector<1x1x2x128xf32> to vector<2x128xf32>
    %25 = arith.mulf %3, %24 : vector<2x128xf32>
    %26 = arith.addf %22, %25 : vector<2x128xf32>
    %c0_30 = arith.constant 0 : index
    %c6 = arith.constant 6 : index
    %c0_31 = arith.constant 0 : index
    %c0_32 = arith.constant 0 : index
    %27 = vector.load %arg2[%c0_30, %c6, %c0_31, %c0_32] : memref<1x12x2x128xf32, #tpu.memory_space<vmem>>, vector<1x1x2x128xf32>
    %28 = vector.shape_cast %27 : vector<1x1x2x128xf32> to vector<2x128xf32>
    %29 = arith.mulf %5, %28 : vector<2x128xf32>
    %30 = arith.addf %26, %29 : vector<2x128xf32>
    %c0_33 = arith.constant 0 : index
    %c7 = arith.constant 7 : index
    %c0_34 = arith.constant 0 : index
    %c0_35 = arith.constant 0 : index
    %31 = vector.load %arg2[%c0_33, %c7, %c0_34, %c0_35] : memref<1x12x2x128xf32, #tpu.memory_space<vmem>>, vector<1x1x2x128xf32>
    %32 = vector.shape_cast %31 : vector<1x1x2x128xf32> to vector<2x128xf32>
    %33 = arith.addf %30, %32 : vector<2x128xf32>
    %c0_36 = arith.constant 0 : index
    %c8 = arith.constant 8 : index
    %c0_37 = arith.constant 0 : index
    %c0_38 = arith.constant 0 : index
    %34 = vector.load %arg2[%c0_36, %c8, %c0_37, %c0_38] : memref<1x12x2x128xf32, #tpu.memory_space<vmem>>, vector<1x1x2x128xf32>
    %35 = vector.shape_cast %34 : vector<1x1x2x128xf32> to vector<2x128xf32>
    %36 = arith.mulf %1, %35 : vector<2x128xf32>
    %c0_39 = arith.constant 0 : index
    %c9 = arith.constant 9 : index
    %c0_40 = arith.constant 0 : index
    %c0_41 = arith.constant 0 : index
    %37 = vector.load %arg2[%c0_39, %c9, %c0_40, %c0_41] : memref<1x12x2x128xf32, #tpu.memory_space<vmem>>, vector<1x1x2x128xf32>
    %38 = vector.shape_cast %37 : vector<1x1x2x128xf32> to vector<2x128xf32>
    %39 = arith.mulf %3, %38 : vector<2x128xf32>
    %40 = arith.addf %36, %39 : vector<2x128xf32>
    %c0_42 = arith.constant 0 : index
    %c10 = arith.constant 10 : index
    %c0_43 = arith.constant 0 : index
    %c0_44 = arith.constant 0 : index
    %41 = vector.load %arg2[%c0_42, %c10, %c0_43, %c0_44] : memref<1x12x2x128xf32, #tpu.memory_space<vmem>>, vector<1x1x2x128xf32>
    %42 = vector.shape_cast %41 : vector<1x1x2x128xf32> to vector<2x128xf32>
    %43 = arith.mulf %5, %42 : vector<2x128xf32>
    %44 = arith.addf %40, %43 : vector<2x128xf32>
    %c0_45 = arith.constant 0 : index
    %c11 = arith.constant 11 : index
    %c0_46 = arith.constant 0 : index
    %c0_47 = arith.constant 0 : index
    %45 = vector.load %arg2[%c0_45, %c11, %c0_46, %c0_47] : memref<1x12x2x128xf32, #tpu.memory_space<vmem>>, vector<1x1x2x128xf32>
    %46 = vector.shape_cast %45 : vector<1x1x2x128xf32> to vector<2x128xf32>
    %47 = arith.addf %44, %46 : vector<2x128xf32>
    %c0_48 = arith.constant 0 : index
    %c0_49 = arith.constant 0 : index
    %c0_50 = arith.constant 0 : index
    %c0_51 = arith.constant 0 : index
    %48 = vector.load %arg4[%c0_48, %c0_49, %c0_50, %c0_51] : memref<1x3x2x128xf32, #tpu.memory_space<vmem>>, vector<1x1x2x128xf32>
    %49 = vector.shape_cast %48 : vector<1x1x2x128xf32> to vector<2x128xf32>
    %50 = vector.shape_cast %19 : vector<2x128xf32> to vector<1x1x2x128xf32>
    tpu.vector_store %arg4[%c0_48, %c0_49, %c0_50, %c0_51], %50 {strides = array<i32>} : memref<1x3x2x128xf32, #tpu.memory_space<vmem>>, vector<1x1x2x128xf32>,
    %c0_52 = arith.constant 0 : index
    %c1_53 = arith.constant 1 : index
    %c0_54 = arith.constant 0 : index
    %c0_55 = arith.constant 0 : index
    %51 = vector.load %arg4[%c0_52, %c1_53, %c0_54, %c0_55] : memref<1x3x2x128xf32, #tpu.memory_space<vmem>>, vector<1x1x2x128xf32>
    %52 = vector.shape_cast %51 : vector<1x1x2x128xf32> to vector<2x128xf32>
    %53 = vector.shape_cast %33 : vector<2x128xf32> to vector<1x1x2x128xf32>
    tpu.vector_store %arg4[%c0_52, %c1_53, %c0_54, %c0_55], %53 {strides = array<i32>} : memref<1x3x2x128xf32, #tpu.memory_space<vmem>>, vector<1x1x2x128xf32>,
    %c0_56 = arith.constant 0 : index
    %c2_57 = arith.constant 2 : index
    %c0_58 = arith.constant 0 : index
    %c0_59 = arith.constant 0 : index
    %54 = vector.load %arg4[%c0_56, %c2_57, %c0_58, %c0_59] : memref<1x3x2x128xf32, #tpu.memory_space<vmem>>, vector<1x1x2x128xf32>
    %55 = vector.shape_cast %54 : vector<1x1x2x128xf32> to vector<2x128xf32>
    %56 = vector.shape_cast %47 : vector<2x128xf32> to vector<1x1x2x128xf32>
    tpu.vector_store %arg4[%c0_56, %c2_57, %c0_58, %c0_59], %56 {strides = array<i32>} : memref<1x3x2x128xf32, #tpu.memory_space<vmem>>, vector<1x1x2x128xf32>,
    return
  }
  func.func @transform_0(%arg0: i32, %arg1: i32) -> (i32, i32, i32, i32) {
    %c0_i32 = arith.constant 0 : i32
    %c0_i32_0 = arith.constant 0 : i32
    %c0_i32_1 = arith.constant 0 : i32
    return %arg0, %c0_i32, %arg1, %c0_i32_0 : i32, i32, i32, i32
  }
  func.func @transform_1(%arg0: i32, %arg1: i32) -> (i32, i32, i32, i32) {
    %c0_i32 = arith.constant 0 : i32
    %c0_i32_0 = arith.constant 0 : i32
    %c0_i32_1 = arith.constant 0 : i32
    return %arg0, %c0_i32, %arg1, %c0_i32_0 : i32, i32, i32, i32
  }
  func.func @transform_2(%arg0: i32, %arg1: i32) -> (i32, i32, i32, i32) {
    %c0_i32 = arith.constant 0 : i32
    %c0_i32_0 = arith.constant 0 : i32
    %c0_i32_1 = arith.constant 0 : i32
    return %arg0, %c0_i32, %arg1, %c0_i32_0 : i32, i32, i32, i32
  }
}

</mosaic_0001>

<llo_original>
// kernel: tpu_custom_call.1
$region0: #{tpu_custom_call.1}
  #allocation0 [shape = 'u32[]', space=smem, size = 0x4, offset = 0x4, fixed_abs, tag = 'smem constant byte address 0x4 - core index']
  #allocation1 [shape = 'u32[72,128]{1,0:T(1,128)}', space=vmem, size = 0x9000, scoped, tag = 'internal scratch']
  %s0 = inlined_call_operand.hbm [shape: f32[2,12,2,128], index: 0, kind: input, shape index: {}]
  %s1 = inlined_call_operand.hbm [shape: f32[2,3,2,128], index: 1, kind: input, shape index: {}]
  %s2 = inlined_call_operand.hbm [shape: f32[2,3,2,128], index: 2, kind: output, shape index: {}]
  %s3 = sld [smem:[#allocation0]]
  $region49: #{tpu_custom_call.1} parent=0
    _
  %s5 = ssub.s32 1, %s3
  %s6 = scalar_select 0, %s5, %s3
  $region1: #{tpu_custom_call.1} parent=0
    #allocation2 [shape = 'u8[24576]{0}', space=vmem, size = 0x6000, scoped, tag = 'input window, operand 0']
    #allocation3 [shape = 's32[2]{0}', space=sflag, size = 0x8, scoped, tag = 'scoped memory for tpu_custom_call.1']
    #allocation4 [shape = 's32[2]{0}', space=sflag, size = 0x8, scoped, tag = 'scoped memory for tpu_custom_call.1']
    #allocation5 [shape = 'u8[6144]{0}', space=vmem, size = 0x1800, scoped, tag = 'input window, operand 1']
    #allocation6 [shape = 's32[2]{0}', space=sflag, size = 0x8, scoped, tag = 'scoped memory for tpu_custom_call.1']
    #allocation7 [shape = 'u8[6144]{0}', space=vmem, size = 0x1800, scoped, tag = 'output window, operand 0']
    %7 = vsyncpa [#allocation3], 0
    %s8 = scalar_lea.sflag [#allocation3], 1
    %9 = vsyncpa %s8, 0
    %10 = vsyncpa [#allocation6], 0
    %s11 = scalar_lea.sflag [#allocation6], 1
    %12 = vsyncpa %s11, 0
    %13 = vsyncpa [#allocation4], 0
    %s14 = scalar_lea.sflag [#allocation4], 1
    %15 = vsyncpa %s14, 0
    loop: start=0, step=1, limit=4
    $region2: #{tpu_custom_call.1} parent=1 // loop_pre_header
      _
    $region3: #{tpu_custom_call.1} parent=1 // loop_header
      %s17 = sphi 0, %s21
      %p18 = scmp.ge.s32.totalorder %s17, 4
      %s24 = sphi 0, %s36
      %s25 = sphi 0, %s32
      %s26 = sphi 0, %s24
      %s27 = sphi 0, %s25
      %s28 = sphi 0, %s26
      %s29 = sphi 0, %s27
      %s41 = sphi 0, %s43
      %s44 = sphi 0, %s41
      %s45 = sphi 0, %s44
      %s61 = sphi 0, %s45
      %s69 = sphi 0, %s71
      %s72 = sphi 0, %s69
      %s73 = sphi 0, %s72
      %s89 = sphi 0, %s73
      %s97 = sphi 0, %s99
      %s100 = sphi 0, %s97
      %s101 = sphi 0, %s100
      %s117 = sphi 0, %s101
    $region4: #{tpu_custom_call.1} parent=1 // loop_header_branch
      %20 = sbr.rel (%p18) target = $region8
    $region5: #{tpu_custom_call.1} parent=1 // loop_body
      %s22 = ssub.s32 %s17, 1
      %s23 = ssub.s32 %s17, 2
      %s30 = sadd.s32 1, %s25
      %p31 = scmp.ge.s32.totalorder %s30, 1
      %s32 = scalar_select %p31, 0, %s30
      %s33 = sadd.s32 1, %s24
      %s34 = scalar_select %p31, %s33, %s24
      %p35 = scmp.ge.s32.totalorder %s34, 2
      %s36 = scalar_select %p35, 0, %s34
      %s37 = ssub.s32 %s24, %s36
      %s38 = ssub.s32 %s25, %s32
      %s39 = sor.u32 %s37, %s38
      %p40 = scmp.eq.s32.totalorder %s39, 0
      %s42 = sadd.s32 %s41, 1
      %s43 = scalar_select %p40, %s41, %s42
      %p46 = pneg %p40
      %p47 = scmp.eq.s32.totalorder %s17, 1
      %p48 = por %p46, %p47
      %p49 = scmp.ne.s32.totalorder %s41, %s44
      %p50 = scmp.eq.s32.totalorder %s17, 0
      %p51 = por %p49, %p50
      %p52 = scmp.ne.s32.totalorder %s41, %s44
      %p53 = scmp.eq.s32.totalorder %s22, 1
      %p54 = por %p52, %p53
      %p55 = scmp.ne.s32.totalorder %s44, %s45
      %p56 = scmp.eq.s32.totalorder %s22, 0
      %p57 = por %p55, %p56
      %p58 = scmp.ne.s32.totalorder %s44, %s45
      %p59 = scmp.eq.s32.totalorder %s23, 1
      %p60 = por %p58, %p59
      %p62 = scmp.ne.s32.totalorder %s45, %s61
      %p63 = scmp.eq.s32.totalorder %s23, 0
      %p64 = por %p62, %p63
      %s65 = ssub.s32 %s24, %s36
      %s66 = ssub.s32 %s25, %s32
      %s67 = sor.u32 %s65, %s66
      %p68 = scmp.eq.s32.totalorder %s67, 0
      %s70 = sadd.s32 %s69, 1
      %s71 = scalar_select %p68, %s69, %s70
      %p74 = pneg %p68
      %p75 = scmp.eq.s32.totalorder %s17, 1
      %p76 = por %p74, %p75
      %p77 = scmp.ne.s32.totalorder %s69, %s72
      %p78 = scmp.eq.s32.totalorder %s17, 0
      %p79 = por %p77, %p78
      %p80 = scmp.ne.s32.totalorder %s69, %s72
      %p81 = scmp.eq.s32.totalorder %s22, 1
      %p82 = por %p80, %p81
      %p83 = scmp.ne.s32.totalorder %s72, %s73
      %p84 = scmp.eq.s32.totalorder %s22, 0
      %p85 = por %p83, %p84
      %p86 = scmp.ne.s32.totalorder %s72, %s73
      %p87 = scmp.eq.s32.totalorder %s23, 1
      %p88 = por %p86, %p87
      %p90 = scmp.ne.s32.totalorder %s73, %s89
      %p91 = scmp.eq.s32.totalorder %s23, 0
      %p92 = por %p90, %p91
      %s93 = ssub.s32 %s24, %s36
      %s94 = ssub.s32 %s25, %s32
      %s95 = sor.u32 %s93, %s94
      %p96 = scmp.eq.s32.totalorder %s95, 0
      %s98 = sadd.s32 %s97, 1
      %s99 = scalar_select %p96, %s97, %s98
      %p102 = pneg %p96
      %p103 = scmp.eq.s32.totalorder %s17, 1
      %p104 = por %p102, %p103
      %p105 = scmp.ne.s32.totalorder %s97, %s100
      %p106 = scmp.eq.s32.totalorder %s17, 0
      %p107 = por %p105, %p106
      %p108 = scmp.ne.s32.totalorder %s97, %s100
      %p109 = scmp.eq.s32.totalorder %s22, 1
      %p110 = por %p108, %p109
      %p111 = scmp.ne.s32.totalorder %s100, %s101
      %p112 = scmp.eq.s32.totalorder %s22, 0
      %p113 = por %p111, %p112
      %p114 = scmp.ne.s32.totalorder %s100, %s101
      %p115 = scmp.eq.s32.totalorder %s23, 1
      %p116 = por %p114, %p115
      %p118 = scmp.ne.s32.totalorder %s101, %s117
      %p119 = scmp.eq.s32.totalorder %s23, 0
      %p120 = por %p118, %p119
      %p121 = scmp.le.s32.totalorder 1, %s17
      %p122 = scmp.lt.s32.totalorder %s17, 3
      %p123 = pnand %p121, %p122
      %p124 = pneg %p123
      // Predicated region
      $region9: #{tpu_custom_call.1} parent=5 // pred_check
        _
      $region10: #{tpu_custom_call.1} parent=5 // pred_check_branch
        %126 = sbr.rel (%p123) target = $region12
      $region11: #{tpu_custom_call.1} parent=5 // pred_region
        %s127 = ssub.s32 %s17, 1
      $region12: #{tpu_custom_call.1} parent=5 // pred_fallthru
        _
      %p128 = scmp.lt.s32.totalorder %s17, 2
      // Predicated region
      $region13: #{tpu_custom_call.1} parent=5 // pred_check
        %p129 = pneg %p128
      $region14: #{tpu_custom_call.1} parent=5 // pred_check_branch
        %131 = sbr.rel (%p129) target = $region16
      $region15: #{tpu_custom_call.1} parent=5 // pred_region
        // Predicated region
        $region17: #{tpu_custom_call.1} parent=15 // pred_check
          %p132 = pneg %p51
        $region18: #{tpu_custom_call.1} parent=15 // pred_check_branch
          %134 = sbr.rel (%p132) target = $region20
        $region19: #{tpu_custom_call.1} parent=15 // pred_region
          %s135 = sand.u32 %s41, 1
          %s136 = scalar_lea.sflag [#allocation3], %s135
          %s137 = sand.u32 %s41, 1
          %s138 = smul.addr %s137, 24
          %s139 = scalar_lea.vmem [#allocation2], %s138
          %141 = vsyncadd %s136, 0
          %s142 = smul.addr %s24, 12
          %s143 = sadd.s32 %s25, %s142
          %s144 = smul.addr %s143, 2
          %s145 = scalar_lea.hbm %s0, %s144
          %s146 = sshll.u32 %s145, 4
          %s147 = int_to_ptr.hbm [resolvable:$true] %s146
          %s148 = sshll.u32 %s139, 4
          %s149 = int_to_ptr.vmem [resolvable:$true] %s148
          %154 = dma.hbm_to_vmem [thread:$0]  %s147, 384, %s149, %s136, 32, 32, 2
        $region20: #{tpu_custom_call.1} parent=15 // pred_fallthru
          _
        // Predicated region
        $region21: #{tpu_custom_call.1} parent=15 // pred_check
          %p155 = pneg %p79
        $region22: #{tpu_custom_call.1} parent=15 // pred_check_branch
          %157 = sbr.rel (%p155) target = $region24
        $region23: #{tpu_custom_call.1} parent=15 // pred_region
          %s158 = sand.u32 %s69, 1
          %s159 = scalar_lea.sflag [#allocation6], %s158
          %s160 = sand.u32 %s69, 1
          %s161 = smul.addr %s160, 6
          %s162 = scalar_lea.vmem [#allocation5], %s161
          %164 = vsyncadd %s159, 0
          %s165 = smul.addr %s24, 3
          %s166 = sadd.s32 %s25, %s165
          %s167 = smul.addr %s166, 2
          %s168 = scalar_lea.hbm %s1, %s167
          %s169 = sshll.u32 %s168, 4
          %s170 = int_to_ptr.hbm [resolvable:$true] %s169
          %s171 = sshll.u32 %s162, 4
          %s172 = int_to_ptr.vmem [resolvable:$true] %s171
          %177 = dma.hbm_to_vmem [thread:$0]  %s170, 96, %s172, %s159, 32, 32, 2
        $region24: #{tpu_custom_call.1} parent=15 // pred_fallthru
          _
      $region16: #{tpu_custom_call.1} parent=5 // pred_fallthru
        _
      %p178 = scmp.le.s32.totalorder 1, %s17
      %p179 = scmp.lt.s32.totalorder %s17, 3
      %p180 = pnand %p178, %p179
      %p181 = pneg %p180
      // Predicated region
      $region25: #{tpu_custom_call.1} parent=5 // pred_check
        _
      $region26: #{tpu_custom_call.1} parent=5 // pred_check_branch
        %183 = sbr.rel (%p180) target = $region28
      $region27: #{tpu_custom_call.1} parent=5 // pred_region
        %s184 = ssub.s32 %s17, 1
        %s185 = sand.u32 %s44, 1
        %s186 = scalar_lea.sflag [#allocation3], %s185
        %s187 = sand.u32 %s44, 1
        %s188 = smul.addr %s187, 24
        %s189 = scalar_lea.vmem [#allocation2], %s188
        // Predicated region
        $region29: #{tpu_custom_call.1} parent=27 // pred_check
          %p190 = pneg %p57
        $region30: #{tpu_custom_call.1} parent=27 // pred_check_branch
          %192 = sbr.rel (%p190) target = $region32
        $region31: #{tpu_custom_call.1} parent=27 // pred_region
          %194 = dma.done %s186, 384
        $region32: #{tpu_custom_call.1} parent=27 // pred_fallthru
          _
        %s195 = sand.u32 %s72, 1
        %s196 = scalar_lea.sflag [#allocation6], %s195
        %s197 = sand.u32 %s72, 1
        %s198 = smul.addr %s197, 6
        %s199 = scalar_lea.vmem [#allocation5], %s198
        // Predicated region
        $region33: #{tpu_custom_call.1} parent=27 // pred_check
          %p200 = pneg %p85
        $region34: #{tpu_custom_call.1} parent=27 // pred_check_branch
          %202 = sbr.rel (%p200) target = $region36
        $region35: #{tpu_custom_call.1} parent=27 // pred_region
          %204 = dma.done %s196, 96
        $region36: #{tpu_custom_call.1} parent=27 // pred_fallthru
          _
        %s205 = sand.u32 %s44, 1
        %s206 = scalar_lea.sflag [#allocation3], %s205
        %s207 = sand.u32 %s44, 1
        %s208 = smul.addr %s207, 24
        %s209 = scalar_lea.vmem [#allocation2], %s208
        %p210 = pneg %p57
        %p211 = pneg %p54
        %s212 = sand.u32 %s72, 1
        %s213 = scalar_lea.sflag [#allocation6], %s212
        %s214 = sand.u32 %s72, 1
        %s215 = smul.addr %s214, 6
        %s216 = scalar_lea.vmem [#allocation5], %s215
        %p217 = pneg %p85
        %p218 = pneg %p82
        %p219 = pneg %p113
        %p220 = pneg %p110
        %s221 = sand.u32 %s100, 1
        %s222 = scalar_lea.sflag [#allocation4], %s221
        %s223 = sand.u32 %s100, 1
        %s224 = smul.addr %s223, 6
        %s225 = scalar_lea.vmem [#allocation7], %s224
        %v226 = vld [vmem:[%s199] sm:$0x3]
        %s227 = scalar_lea.vmem %s199, 2 [#allocation5]
        %v228 = vld [vmem:[%s227] sm:$0x3]
        %s229 = scalar_lea.vmem %s199, 4 [#allocation5]
        %v230 = vld [vmem:[%s229] sm:$0x3]
        %v231 = vld [vmem:[%s189] sm:$0x3]
        %v232 = vmul.f32 %v226, %v231
        %s233 = scalar_lea.vmem %s189, 2 [#allocation2]
        %v234 = vld [vmem:[%s233] sm:$0x3]
        %v235 = vmul.f32 %v228, %v234
        %v236 = vadd.f32 %v232, %v235
        %s237 = scalar_lea.vmem %s189, 4 [#allocation2]
        %v238 = vld [vmem:[%s237] sm:$0x3]
        %v239 = vmul.f32 %v230, %v238
        %v240 = vadd.f32 %v236, %v239
        %s241 = scalar_lea.vmem %s189, 6 [#allocation2]
        %v242 = vld [vmem:[%s241] sm:$0x3]
        %v243 = vadd.f32 %v240, %v242
        %s244 = scalar_lea.vmem %s189, 8 [#allocation2]
        %v245 = vld [vmem:[%s244] sm:$0x3]
        %v246 = vmul.f32 %v226, %v245
        %s247 = scalar_lea.vmem %s189, 10 [#allocation2]
        %v248 = vld [vmem:[%s247] sm:$0x3]
        %v249 = vmul.f32 %v228, %v248
        %v250 = vadd.f32 %v246, %v249
        %s251 = scalar_lea.vmem %s189, 12 [#allocation2]
        %v252 = vld [vmem:[%s251] sm:$0x3]
        %v253 = vmul.f32 %v230, %v252
        %v254 = vadd.f32 %v250, %v253
        %s255 = scalar_lea.vmem %s189, 14 [#allocation2]
        %v256 = vld [vmem:[%s255] sm:$0x3]
        %v257 = vadd.f32 %v254, %v256
        %s258 = scalar_lea.vmem %s189, 16 [#allocation2]
        %v259 = vld [vmem:[%s258] sm:$0x3]
        %v260 = vmul.f32 %v226, %v259
        %s261 = scalar_lea.vmem %s189, 18 [#allocation2]
        %v262 = vld [vmem:[%s261] sm:$0x3]
        %v263 = vmul.f32 %v228, %v262
        %v264 = vadd.f32 %v260, %v263
        %s265 = scalar_lea.vmem %s189, 20 [#allocation2]
        %v266 = vld [vmem:[%s265] sm:$0x3]
        %v267 = vmul.f32 %v230, %v266
        %v268 = vadd.f32 %v264, %v267
        %s269 = scalar_lea.vmem %s189, 22 [#allocation2]
        %v270 = vld [vmem:[%s269] sm:$0x3]
        %v271 = vadd.f32 %v268, %v270
        %272 = vst [vmem:[%s225] sm:$0x3] %v243
        %s273 = scalar_lea.vmem %s225, 2 [#allocation7]
        %274 = vst [vmem:[%s273] sm:$0x3] %v257
        %s275 = scalar_lea.vmem %s225, 4 [#allocation7]
        %276 = vst [vmem:[%s275] sm:$0x3] %v271
        %s277 = sand.u32 %s100, 1
        %s278 = scalar_lea.sflag [#allocation4], %s277
        %s279 = sand.u32 %s100, 1
        %s280 = smul.addr %s279, 6
        %s281 = scalar_lea.vmem [#allocation7], %s280
        // Predicated region
        $region37: #{tpu_custom_call.1} parent=27 // pred_check
          %p282 = pneg %p110
        $region38: #{tpu_custom_call.1} parent=27 // pred_check_branch
          %284 = sbr.rel (%p282) target = $region40
        $region39: #{tpu_custom_call.1} parent=27 // pred_region
          %286 = vsyncadd %s278, 0
          %s287 = smul.addr %s26, 3
          %s288 = sadd.s32 %s27, %s287
          %s289 = smul.addr %s288, 2
          %s290 = scalar_lea.hbm %s2, %s289
          %s291 = sshll.u32 %s281, 4
          %s292 = int_to_ptr.vmem [resolvable:$true] %s291
          %s293 = sshll.u32 %s290, 4
          %s294 = int_to_ptr.hbm [resolvable:$true] %s293
          %299 = dma.vmem_to_hbm [thread:$0]  %s292, 96, %s294, %s278, 32, 32, 2
        $region40: #{tpu_custom_call.1} parent=27 // pred_fallthru
          _
      $region28: #{tpu_custom_call.1} parent=5 // pred_fallthru
        _
      %p300 = scmp.le.s32.totalorder 2, %s17
      // Predicated region
      $region41: #{tpu_custom_call.1} parent=5 // pred_check
        %p301 = pneg %p300
      $region42: #{tpu_custom_call.1} parent=5 // pred_check_branch
        %303 = sbr.rel (%p301) target = $region44
      $region43: #{tpu_custom_call.1} parent=5 // pred_region
        %s304 = ssub.s32 %s17, 2
        // Predicated region
        $region45: #{tpu_custom_call.1} parent=43 // pred_check
          %p305 = pneg %p116
        $region46: #{tpu_custom_call.1} parent=43 // pred_check_branch
          %307 = sbr.rel (%p305) target = $region48
        $region47: #{tpu_custom_call.1} parent=43 // pred_region
          %s308 = sand.u32 %s101, 1
          %s309 = scalar_lea.sflag [#allocation4], %s308
          %s310 = sand.u32 %s101, 1
          %s311 = smul.addr %s310, 6
          %s312 = scalar_lea.vmem [#allocation7], %s311
          %314 = dma.done %s309, 96
        $region48: #{tpu_custom_call.1} parent=43 // pred_fallthru
          _
      $region44: #{tpu_custom_call.1} parent=5 // pred_fallthru
        _
    $region6: #{tpu_custom_call.1} parent=1 // loop_footer
      %s21 = sadd.s32 1, %s17
    $region7: #{tpu_custom_call.1} parent=1 // loop_footer_branch
      %16 = sbr.rel target = $region3
    $region8: #{tpu_custom_call.1} parent=1 // loop_exit
      _
    %315 = vsyncpa [#allocation3], 1
    %s316 = scalar_lea.sflag [#allocation3], 1
    %317 = vsyncpa %s316, 1
    %318 = vsyncpa [#allocation6], 1
    %s319 = scalar_lea.sflag [#allocation6], 1
    %320 = vsyncpa %s319, 1
    %321 = vsyncpa [#allocation4], 1
    %s322 = scalar_lea.sflag [#allocation4], 1
    %323 = vsyncpa %s322, 1

</llo_original>
